<compile_context>
chip_gen: v6e
topology: v6e:2x2x1
jax: 0.10.0
libtpu: 0.0.40
codegen_flags: <defaults>
</compile_context>

<pallas_src>
import jax
import jax.numpy as jnp
from jax.experimental import pallas as pl
from jax.experimental.pallas import tpu as pltpu

EPS = 1e-12  # matches torch F.normalize default eps


def _round_up(x: int, m: int) -> int:
    return ((x + m - 1) // m) * m


def arc_margin_kernel(f_ref, wt_ref, f_rinv_ref, w_rinv_ref, o_ref, acc_ref):
    # f_ref:      (TB, TK) bfloat16 feature tile
    # wt_ref:     (TK, TC) bfloat16 pre-transposed weight tile
    # f_rinv_ref: (TB, 1)  float32 reciprocal feature-row norms
    # w_rinv_ref: (1, TC)  float32 reciprocal weight-row norms
    # o_ref:      (TB, TC) float32 cosine tile
    # acc_ref:    (TB, TC) float32 accumulator scratch (persists across K steps)
    k = pl.program_id(2)

    @pl.when(k == 0)
    def _():
        acc_ref[...] = jnp.zeros_like(acc_ref)

    # Unnormalized matmul on the MXU: bf16 operands, f32 accumulation.
    acc_ref[...] += jnp.dot(
        f_ref[...], wt_ref[...], preferred_element_type=jnp.float32
    )

    @pl.when(k == pl.num_programs(2) - 1)
    def _():
        # Scale the small output tile by the row / column reciprocal norms.
        o_ref[...] = (
            acc_ref[...] * f_rinv_ref[...] * w_rinv_ref[...]
        ).astype(o_ref.dtype)


def arc_margin_product(features: jax.Array, weight: jax.Array,
                       *, tb: int | None = None, tc: int | None = None,
                       tk: int | None = None) -> jax.Array:
    """features: (B, D), weight: (C, D) -> cosine: (B, C) float32."""
    B, D = features.shape
    C, D2 = weight.shape
    assert D == D2

    # Tile sizes: batch tile multiple of 8 (sublanes), class tile multiple of
    # 128 (lanes), reduction tile multiple of 128 lanes for the LHS (or the
    # full D extent when D is small). Sized so double-buffered tiles fit
    # comfortably in v7x's smaller VMEM as well.
    if tb is None:
        tb = min(_round_up(B, 8), 256)
    if tc is None:
        tc = min(_round_up(C, 128), 512)
    if tk is None:
        tk = D if D <= 1024 else 512

    Bp = _round_up(B, tb)
    Cp = _round_up(C, tc)
    Dp = _round_up(D, tk)

    # Reciprocal norms in f32 (accurate), computed once outside the kernel.
    f32 = features.astype(jnp.float32)
    f_rinv = jax.lax.rsqrt(jnp.maximum(jnp.sum(f32 * f32, axis=1), EPS * EPS))
    f_rinv = jnp.pad(f_rinv, (0, Bp - B)).reshape(Bp, 1)              # (Bp, 1)

    w32 = weight.astype(jnp.float32)
    w_rinv = jax.lax.rsqrt(jnp.maximum(jnp.sum(w32 * w32, axis=1), EPS * EPS))
    w_rinv = jnp.pad(w_rinv, (0, Cp - C)).reshape(1, Cp)              # (1, Cp)

    # bf16 operands for the MXU; zero-padding does not affect dot products.
    f_bf = jnp.pad(f32.astype(jnp.bfloat16), ((0, Bp - B), (0, Dp - D)))
    w_t = jnp.pad(w32.T.astype(jnp.bfloat16), ((0, Dp - D), (0, Cp - C)))

    out_padded = pl.pallas_call(
        arc_margin_kernel,
        out_shape=jax.ShapeDtypeStruct((Bp, Cp), jnp.float32),
        grid_spec=pltpu.PrefetchScalarGridSpec(
            num_scalar_prefetch=0,
            grid=(Bp // tb, Cp // tc, Dp // tk),
            in_specs=[
                pl.BlockSpec((tb, tk), lambda i, j, k: (i, k)),   # features
                pl.BlockSpec((tk, tc), lambda i, j, k: (k, j)),   # weight^T
                pl.BlockSpec((tb, 1), lambda i, j, k: (i, 0)),    # 1/||f||
                pl.BlockSpec((1, tc), lambda i, j, k: (0, j)),    # 1/||w||
            ],
            out_specs=pl.BlockSpec((tb, tc), lambda i, j, k: (i, j)),
            scratch_shapes=[pltpu.VMEM((tb, tc), jnp.float32)],
        ),
        compiler_params=pltpu.CompilerParams(
            # Batch/class axes are independent -> megacore sharding on v7x;
            # the reduction axis carries the accumulator -> arbitrary.
            dimension_semantics=("parallel", "parallel", "arbitrary"),
        ),
    )(f_bf, w_t, f_rinv, w_rinv)

    return out_padded[:B, :C]


def xavier_uniform(key, out_features, in_features):
    """Deterministic stand-in for nn.init.xavier_uniform_ on (C, D)."""
    bound = (6.0 / (in_features + out_features)) ** 0.5
    return jax.random.uniform(
        key, (out_features, in_features), dtype=jnp.float32,
        minval=-bound, maxval=bound,
    )


if __name__ == "__main__":
    B = 8              # batch
    IN_FEATURES = 32   # embedding dim D
    OUT_FEATURES = 16  # number of classes C

    key = jax.random.PRNGKey(0)
    k_feat, k_w = jax.random.split(key)

    features = jax.random.normal(k_feat, (B, IN_FEATURES), dtype=jnp.float32)
    weight = xavier_uniform(k_w, OUT_FEATURES, IN_FEATURES)

    cosine = arc_margin_product(features, weight)
    cosine = jax.block_until_ready(cosine)

    # Reference (f32) matching torch: F.linear(F.normalize(f), F.normalize(w)).
    f_ref = features / jnp.maximum(
        jnp.linalg.norm(features, axis=-1, keepdims=True), EPS)
    w_ref = weight / jnp.maximum(
        jnp.linalg.norm(weight, axis=-1, keepdims=True), EPS)
    ref = f_ref @ w_ref.T

    assert cosine.shape == (B, OUT_FEATURES)
    # bf16 MXU operands with f32 accumulation: cosine error well below 2e-2.
    assert jnp.allclose(cosine, ref, atol=2e-2, rtol=2e-2), (
        float(jnp.max(jnp.abs(cosine - ref))))

    print("KERNEL_OK")
</pallas_src>

<mosaic_0001>
module attributes {stable_mosaic.version = 11 : i64} {
  func.func @arc_margin_kernel(%arg0: i32, %arg1: i32, %arg2: i32, %arg3: memref<8x32xbf16, #tpu.memory_space<vmem>>, %arg4: memref<32x128xbf16, #tpu.memory_space<vmem>>, %arg5: memref<8x1xf32, #tpu.memory_space<vmem>>, %arg6: memref<1x128xf32, #tpu.memory_space<vmem>>, %arg7: memref<8x128xf32, #tpu.memory_space<vmem>>, %arg8: memref<8x128xf32, #tpu.memory_space<vmem>>) attributes {dimension_semantics = [#tpu.dimension_semantics<parallel>, #tpu.dimension_semantics<parallel>, #tpu.dimension_semantics<arbitrary>], iteration_bounds = array<i64: 1, 1, 1>, scalar_prefetch = 0 : i64, scratch_operands = 1 : i64, tpu.core_type = #tpu.core_type<tc>, window_params = [{transform_indices = @transform_0, window_bounds = array<i64: 8, 32>}, {transform_indices = @transform_1, window_bounds = array<i64: 32, 128>}, {transform_indices = @transform_2, window_bounds = array<i64: 8, 1>}, {transform_indices = @transform_3, window_bounds = array<i64: 1, 128>}, {transform_indices = @transform_4, window_bounds = array<i64: 8, 128>}]} {
    %c0_i32 = arith.constant 0 : i32
    %0 = arith.cmpi eq, %arg2, %c0_i32 : i32
    %1 = arith.extui %0 : i1 to i32
    %c0_i32_0 = arith.constant 0 : i32
    %2 = arith.cmpi ne, %1, %c0_i32_0 : i32
    scf.if %2 {
      %cst_10 = arith.constant 0.000000e+00 : f32
      %12 = vector.broadcast %cst_10 : f32 to vector<8x128xf32>
      %c0_11 = arith.constant 0 : index
      %c0_12 = arith.constant 0 : index
      %13 = vector.load %arg8[%c0_11, %c0_12] : memref<8x128xf32, #tpu.memory_space<vmem>>, vector<8x128xf32>
      tpu.vector_store %arg8[%c0_11, %c0_12], %12 {strides = array<i32>} : memref<8x128xf32, #tpu.memory_space<vmem>>, vector<8x128xf32>,
    } else {
    }
    %c0 = arith.constant 0 : index
    %c0_1 = arith.constant 0 : index
    %3 = vector.load %arg8[%c0, %c0_1] : memref<8x128xf32, #tpu.memory_space<vmem>>, vector<8x128xf32>
    %c0_2 = arith.constant 0 : index
    %c0_3 = arith.constant 0 : index
    %4 = vector.load %arg3[%c0_2, %c0_3] : memref<8x32xbf16, #tpu.memory_space<vmem>>, vector<8x32xbf16>
    %c0_4 = arith.constant 0 : index
    %c0_5 = arith.constant 0 : index
    %5 = vector.load %arg4[%c0_4, %c0_5] : memref<32x128xbf16, #tpu.memory_space<vmem>>, vector<32x128xbf16>
    %cst = arith.constant dense<0.000000e+00> : vector<8x128xf32>
    %6 = tpu.matmul %4, %5, %cst {dimension_numbers = #tpu.dot_dimension_numbers<[1], [0], [0], [1], [0, 0, 1, 1], [], []>} : vector<8x32xbf16>, vector<32x128xbf16>, vector<8x128xf32> -> vector<8x128xf32>
    %7 = arith.addf %3, %6 : vector<8x128xf32>
    %c0_6 = arith.constant 0 : index
    %c0_7 = arith.constant 0 : index
    %8 = vector.load %arg8[%c0_6, %c0_7] : memref<8x128xf32, #tpu.memory_space<vmem>>, vector<8x128xf32>
    tpu.vector_store %arg8[%c0_6, %c0_7], %7 {strides = array<i32>} : memref<8x128xf32, #tpu.memory_space<vmem>>, vector<8x128xf32>,
    %c0_i32_8 = arith.constant 0 : i32
    %9 = arith.cmpi eq, %arg2, %c0_i32_8 : i32
    %10 = arith.extui %9 : i1 to i32
    %c0_i32_9 = arith.constant 0 : i32
    %11 = arith.cmpi ne, %10, %c0_i32_9 : i32
    scf.if %11 {
      %c0_10 = arith.constant 0 : index
      %c0_11 = arith.constant 0 : index
      %12 = vector.load %arg8[%c0_10, %c0_11] : memref<8x128xf32, #tpu.memory_space<vmem>>, vector<8x128xf32>
      %c0_12 = arith.constant 0 : index
      %c0_13 = arith.constant 0 : index
      %13 = vector.load %arg5[%c0_12, %c0_13] : memref<8x1xf32, #tpu.memory_space<vmem>>, vector<8x1xf32>
      %14 = vector.broadcast %13 : vector<8x1xf32> to vector<8x128xf32>
      %15 = arith.mulf %12, %14 : vector<8x128xf32>
      %c0_14 = arith.constant 0 : index
      %c0_15 = arith.constant 0 : index
      %16 = vector.load %arg6[%c0_14, %c0_15] : memref<1x128xf32, #tpu.memory_space<vmem>>, vector<1x128xf32>
      %17 = vector.broadcast %16 : vector<1x128xf32> to vector<8x128xf32>
      %18 = arith.mulf %15, %17 : vector<8x128xf32>
      %c0_16 = arith.constant 0 : index
      %c0_17 = arith.constant 0 : index
      %19 = vector.load %arg7[%c0_16, %c0_17] : memref<8x128xf32, #tpu.memory_space<vmem>>, vector<8x128xf32>
      tpu.vector_store %arg7[%c0_16, %c0_17], %18 {strides = array<i32>} : memref<8x128xf32, #tpu.memory_space<vmem>>, vector<8x128xf32>,
    } else {
    }
    return
  }
  func.func @transform_0(%arg0: i32, %arg1: i32, %arg2: i32) -> (i32, i32) {
    %c0_i32 = arith.constant 0 : i32
    return %arg0, %arg2 : i32, i32
  }
  func.func @transform_1(%arg0: i32, %arg1: i32, %arg2: i32) -> (i32, i32) {
    %c0_i32 = arith.constant 0 : i32
    return %arg2, %arg1 : i32, i32
  }
  func.func @transform_2(%arg0: i32, %arg1: i32, %arg2: i32) -> (i32, i32) {
    %c0_i32 = arith.constant 0 : i32
    %c0_i32_0 = arith.constant 0 : i32
    return %arg0, %c0_i32 : i32, i32
  }
  func.func @transform_3(%arg0: i32, %arg1: i32, %arg2: i32) -> (i32, i32) {
    %c0_i32 = arith.constant 0 : i32
    %c0_i32_0 = arith.constant 0 : i32
    return %c0_i32, %arg1 : i32, i32
  }
  func.func @transform_4(%arg0: i32, %arg1: i32, %arg2: i32) -> (i32, i32) {
    %c0_i32 = arith.constant 0 : i32
    return %arg0, %arg1 : i32, i32
  }
}

</mosaic_0001>

<llo_original>
// kernel: tpu_custom_call.1
$region0: #{tpu_custom_call.1}
  #allocation0 [shape = 'u32[]', space=smem, size = 0x4, offset = 0x4, fixed_abs, tag = 'smem constant byte address 0x4 - core index']
  #allocation1 [shape = 'u32[144,128]{1,0:T(1,128)}', space=vmem, size = 0x12000, scoped, tag = 'internal scratch']
  #allocation2 [shape = 'f32[8,128]{1,0:T(8,128)}', space=vmem, size = 0x1000, scoped, tag = 'scratch operand']
  %s0 = inlined_call_operand.vmem [shape: bf16[8,32], index: 0, kind: input, shape index: {}]
  %s1 = inlined_call_operand.hbm [shape: bf16[32,128], index: 1, kind: input, shape index: {}]
  %s2 = inlined_call_operand.vmem [shape: f32[8,1], index: 2, kind: input, shape index: {}]
  %s3 = inlined_call_operand.vmem [shape: f32[1,128], index: 3, kind: input, shape index: {}]
  %s4 = inlined_call_operand.hbm [shape: f32[8,128], index: 4, kind: output, shape index: {}]
  %s5 = sld [smem:[#allocation0]]
  $region38: #{tpu_custom_call.1} parent=0
    _
  %s7 = ssub.s32 1, %s5
  %s8 = scalar_select 0, %s7, %s5
  $region1: #{tpu_custom_call.1} parent=0
    #allocation3 [shape = 'u8[8192]{0}', space=vmem, size = 0x2000, scoped, tag = 'input window, operand 1, single buffered']
    #allocation4 [shape = 's32[1]{0}', space=sflag, size = 0x4, scoped, tag = 'scoped memory for tpu_custom_call.1']
    #allocation5 [shape = 's32[1]{0}', space=sflag, size = 0x4, scoped, tag = 'scoped memory for tpu_custom_call.1']
    #allocation6 [shape = 'u8[4096]{0}', space=vmem, size = 0x1000, scoped, tag = 'output window, operand 0, single buffered']
    %9 = vsyncpa [#allocation4], 0
    %10 = vsyncpa [#allocation5], 0
    // Predicated region
    $region2: #{tpu_custom_call.1} parent=1 // pred_check
      _
    $region3: #{tpu_custom_call.1} parent=1 // pred_check_branch
      %12 = sbr.rel (0) target = $region5
    $region4: #{tpu_custom_call.1} parent=1 // pred_region
      _
    $region5: #{tpu_custom_call.1} parent=1 // pred_fallthru
      _
    // Predicated region
    $region6: #{tpu_custom_call.1} parent=1 // pred_check
      _
    $region7: #{tpu_custom_call.1} parent=1 // pred_check_branch
      %14 = sbr.rel (0) target = $region9
    $region8: #{tpu_custom_call.1} parent=1 // pred_region
      %s16 = ssub.s32 256, 256
      %17 = vsyncadd [#allocation4], %s16
      %s18 = sshll.u32 [#allocation3], 4
      %s19 = int_to_ptr.vmem [resolvable:$true] %s18
      %24 = dma.hbm_to_vmem [thread:$0]  %s1, 256, %s19, [#allocation4], 64, 64, 4
    $region9: #{tpu_custom_call.1} parent=1 // pred_fallthru
      _
    // Predicated region
    $region10: #{tpu_custom_call.1} parent=1 // pred_check
      _
    $region11: #{tpu_custom_call.1} parent=1 // pred_check_branch
      %26 = sbr.rel (0) target = $region13
    $region12: #{tpu_custom_call.1} parent=1 // pred_region
      _
    $region13: #{tpu_custom_call.1} parent=1 // pred_fallthru
      _
    // Predicated region
    $region14: #{tpu_custom_call.1} parent=1 // pred_check
      _
    $region15: #{tpu_custom_call.1} parent=1 // pred_check_branch
      %28 = sbr.rel (0) target = $region17
    $region16: #{tpu_custom_call.1} parent=1 // pred_region
      _
    $region17: #{tpu_custom_call.1} parent=1 // pred_fallthru
      _
    // Predicated region
    $region18: #{tpu_custom_call.1} parent=1 // pred_check
      _
    $region19: #{tpu_custom_call.1} parent=1 // pred_check_branch
      %30 = sbr.rel (0) target = $region21
    $region20: #{tpu_custom_call.1} parent=1 // pred_region
      %31 = dma.done [#allocation4], 256
    $region21: #{tpu_custom_call.1} parent=1 // pred_fallthru
      _
    %p33 = scmp.eq.s32.totalorder 0, 0
    // Predicated region
    $region22: #{tpu_custom_call.1} parent=1 // pred_check
      %p34 = pneg %p33
    $region23: #{tpu_custom_call.1} parent=1 // pred_check_branch
      %36 = sbr.rel (%p34) target = $region25
    $region24: #{tpu_custom_call.1} parent=1 // pred_region
      %37 = vst [vmem:[#allocation2] sm:$0xff] 0.0
    $region25: #{tpu_custom_call.1} parent=1 // pred_fallthru
      _
    %v38 = vld [vmem:[#allocation2] sm:$0xff]
    %v39 = vld [vmem:[%s0] sm:$0xf]
    %v40 = vld [vmem:[#allocation3] sm:$0xf]
    %v41 = vld [vmem:[#allocation3 + $0x4] sm:$0xf]
    %v42 = vld [vmem:[#allocation3 + $0x8] sm:$0xf]
    %v43 = vld [vmem:[#allocation3 + $0xc] sm:$0xf]
    %v48 = vunpack.c.l.b16 %v40
    %v49 = vunpack.c.l.b16 %v41
    %v50 = vunpack.c.l.b16 %v42
    %v51 = vunpack.c.l.b16 %v43
    %v52 = vpack.c.b16 %v49, %v48
    %v53 = vpack.c.b16 %v51, %v50
    %vm56 = vcmask 261120
    %v58 = vsel %vm56, %v39, 0
    %60 = vmatprep.subr.bf16.mxu0 0
    %61 = vmatpush1.bf16.msra.mxu0 0
    %62 = vmatprep.subr.bf16.mxu0 0
    %63 = vmatpush1.bf16.msra.mxu0 0
    %64 = vmatprep.subr.bf16.mxu0 0
    %65 = vmatpush1.bf16.msra.mxu0 0
    %66 = vmatprep.subr.bf16.mxu0 0
    %67 = vmatpush1.bf16.msra.mxu0 0
    %68 = vmatprep.subr.bf16.mxu0 0
    %69 = vmatpush1.bf16.msra.mxu0 0
    %70 = vmatprep.subr.bf16.mxu0 0
    %71 = vmatpush1.bf16.msra.mxu0 0
    %72 = vmatprep.subr.bf16.mxu0 0
    %73 = vmatpush1.bf16.msra.mxu0 %v53
    %74 = vmatprep.subr.bf16.mxu0 0
    %75 = vmatpush1.bf16.msra.mxu0 %v52
    %76 = vmatprep.subr.bf16.mxu0 0
    %77 = vmatpush2.bf16.msra.mxu0 0
    %78 = vmatprep.subr.bf16.mxu0 0
    %79 = vmatpush2.bf16.msra.mxu0 0
    %80 = vmatprep.subr.bf16.mxu0 0
    %81 = vmatpush2.bf16.msra.mxu0 0
    %82 = vmatprep.subr.bf16.mxu0 0
    %83 = vmatpush2.bf16.msra.mxu0 0
    %84 = vmatprep.subr.bf16.mxu0 0
    %85 = vmatpush2.bf16.msra.mxu0 0
    %86 = vmatprep.subr.bf16.mxu0 0
    %87 = vmatpush2.bf16.msra.mxu0 0
    %88 = vmatprep.subr.bf16.mxu0 0
    %89 = vmatpush2.bf16.msra.mxu0 0
    %90 = vmatprep.subr.bf16.mxu0 0
    %91 = vmatpush2.bf16.msra.mxu0 0
    %92 = vmatprep.mubr.bf16.mxu0 0
    %93 = vmatmul.mubr.bf16.gmra.mxu0 %v58
    %v94 = vpop.f32.mrf.mxu0
    %v95 = vadd.f32 0.0, %v94
    %v96 = vpop.f32.mrf.mxu0
    %v97 = vpop.f32.mrf.mxu0
    %v98 = vpop.f32.mrf.mxu0
    %99 = vdwg.mxu0
    %v100 = vadd.f32 %v38, %v95
    %101 = vst [vmem:[#allocation2] sm:$0xff] %v100
    // Predicated region
    $region26: #{tpu_custom_call.1} parent=1 // pred_check
      %p102 = pneg %p33
    $region27: #{tpu_custom_call.1} parent=1 // pred_check_branch
      %104 = sbr.rel (%p102) target = $region29
    $region28: #{tpu_custom_call.1} parent=1 // pred_region
      %v105 = vld [vmem:[#allocation2] sm:$0xff]
      %v106 = vld [vmem:[%s2] sm:$0xff]
      %108 = vset.pattern.permute.xlu0 0
      %109 = vperm.xlu0 %108, %v106
      %v110 = vpop.permute.xlu0 %109
      %v112 = vmul.f32 %v105, %v110
      %v113 = vld [vmem:[%s3] sm:$0x1]
      %v115 = vlaneseq
      %v116 = vshrl.u32 %v115, 7
      %v117 = vsub.s32 0, %v116
      %v118 = vrot.slane %v113, %v117
      %v120 = vmul.f32 %v112, %v118
      %121 = vst [vmem:[#allocation6] sm:$0xff] %v120
    $region29: #{tpu_custom_call.1} parent=1 // pred_fallthru
      _
    // Predicated region
    $region30: #{tpu_custom_call.1} parent=1 // pred_check
      _
    $region31: #{tpu_custom_call.1} parent=1 // pred_check_branch
      %123 = sbr.rel (0) target = $region33
    $region32: #{tpu_custom_call.1} parent=1 // pred_region
      %s125 = ssub.s32 128, 128
      %126 = vsyncadd [#allocation5], %s125
      %s128 = sshll.u32 [#allocation6], 4
      %s129 = int_to_ptr.vmem [resolvable:$true] %s128
      %131 = dma.vmem_to_hbm [thread:$0]  %s129, 128, %s4, [#allocation5]
    $region33: #{tpu_custom_call.1} parent=1 // pred_fallthru
      _
    // Predicated region
    $region34: #{tpu_custom_call.1} parent=1 // pred_check
      _
    $region35: #{tpu_custom_call.1} parent=1 // pred_check_branch
      %133 = sbr.rel (0) target = $region37
    $region36: #{tpu_custom_call.1} parent=1 // pred_region
      %134 = dma.done [#allocation5], 128
    $region37: #{tpu_custom_call.1} parent=1 // pred_fallthru
      _
    %135 = vsyncpa [#allocation4], 1
    %136 = vsyncpa [#allocation5], 1

</llo_original>
